<compile_context>
chip_gen: v5e
topology: v5e:2x2
jax: 0.10.0
libtpu: 0.0.40
codegen_flags: <defaults>
</compile_context>

<pallas_src>
import functools

import jax
import jax.numpy as jnp
from jax import lax
from jax.experimental import pallas as pl
from jax.experimental.pallas import tpu as pltpu

TEMP = 0.05  # stands in for args.temp


# ---------------------------------------------------------------------------
# Kernel 1: encode (bf16 MXU, f32 acc) + banded masked-mean pooling (bf16 MXU,
# f32 acc).  One grid step = k whole examples (chunk = k*S token rows); the
# step writes the pooled vectors of exactly those examples, so the grid axis
# is 'parallel' and needs no accumulator or init/finalize phases.
# ---------------------------------------------------------------------------
def _encode_pool_kernel(q_ref, p_ref, n_ref,
                        qband_ref, pband_ref, nband_ref,
                        wq_ref, biasq_ref, wr_ref, biasr_ref,
                        clsq_ref, clsp_ref, clsn_ref):
  f32, bf16 = jnp.float32, jnp.bfloat16

  # Encode: bf16 MXU matmuls with f32 accumulation; bias + tanh in f32 (EUP).
  q_enc = jnp.tanh(
      jnp.dot(q_ref[...], wq_ref[...], preferred_element_type=f32)
      + biasq_ref[...])
  p_enc = jnp.tanh(
      jnp.dot(p_ref[...], wr_ref[...], preferred_element_type=f32)
      + biasr_ref[...])
  n_enc = jnp.tanh(
      jnp.dot(n_ref[...], wr_ref[...], preferred_element_type=f32)
      + biasr_ref[...])

  # Banded masked-mean pooling: (k, chunk) x (chunk, H) bf16 MXU matmuls with
  # f32 accumulation.  Each step writes its own k pooled rows exactly once.
  clsq_ref[...] = jnp.dot(qband_ref[...], q_enc.astype(bf16),
                          preferred_element_type=f32)
  clsp_ref[...] = jnp.dot(pband_ref[...], p_enc.astype(bf16),
                          preferred_element_type=f32)
  clsn_ref[...] = jnp.dot(nband_ref[...], n_enc.astype(bf16),
                          preferred_element_type=f32)


# ---------------------------------------------------------------------------
# Kernel 2: 1/temp scale (f32) + similarity matmuls.  Tiny single-block call.
# ---------------------------------------------------------------------------
def _logits_kernel(clsq_ref, clsp_ref, clsn_ref, lpos_ref, lneg_ref, *,
                   inv_temp):
  clsq = clsq_ref[...] * inv_temp            # 1/temp applied in f32 here
  dims = (((1,), (1,)), ((), ()))            # contract hidden of both (trans_b)
  lpos_ref[...] = lax.dot_general(clsq, clsp_ref[...], dimension_numbers=dims,
                                  preferred_element_type=jnp.float32)
  lneg_ref[...] = lax.dot_general(clsq, clsn_ref[...], dimension_numbers=dims,
                                  preferred_element_type=jnp.float32)


def _plan_tiles(B, S, H):
  """Choose examples-per-chunk k, padded batch b_pad and vmem_limit_bytes.

  chunk = k*S token rows per grid step; k is a multiple of 8 so (k, chunk)
  band and (k, H) output blocks satisfy the (8, 128) rule when multi-chunk.
  The budget is derived from the physical VMEM of the attached generation
  (v7x 64 MiB, v5e/v6e 128 MiB) and counts double-buffered token/band/output
  streams, double-buffered weights and live f32 encode temporaries.
  """
  try:
    phys = int(pltpu.get_tpu_info().vmem_capacity_bytes)
  except Exception:  # query unavailable: assume the smallest generation (v7x)
    phys = 64 * 1024 * 1024
  vmem_limit = min((phys * 3) // 4, 96 * 1024 * 1024)
  budget = int(vmem_limit * 0.8)

  def vmem_bytes(k):
    chunk = k * S
    tokens = 3 * 2 * chunk * H * 2            # q/pos/neg bf16, double-buffered
    bands = 3 * 2 * k * chunk * 2             # pooling bands bf16, double-buffered
    outs = 3 * 2 * k * H * 4                  # pooled f32 outputs, double-buffered
    weights = 2 * 2 * H * H * 2 + 2 * 2 * H * 4  # Wq/Wr bf16 + biases f32, x2 bufs
    temps = 3 * chunk * H * 4                 # live f32 encode temporaries
    return tokens + bands + outs + weights + temps

  b_ceil = ((B + 7) // 8) * 8
  k, best = 8, 8
  while k <= b_ceil:
    if vmem_bytes(k) <= budget and k * S <= 2048:
      best = k
    k += 8
  k = best
  if k >= b_ceil:
    k = b_ceil                                # single chunk covers whole batch
  b_pad = ((B + k - 1) // k) * k
  return k, b_pad, int(vmem_limit)


def question_reference_density(q_tok, q_mask, p_tok, p_mask, n_tok, n_mask,
                               wq, bq, wr, br, temp=TEMP):
  B, S, H = q_tok.shape
  f32, bf16 = jnp.float32, jnp.bfloat16

  k, b_pad, vmem_limit = _plan_tiles(B, S, H)
  num_chunks = b_pad // k
  chunk = k * S
  rows = b_pad * S

  # --- host-side (glue) preparation ---------------------------------------
  def pad_flatten(tok):
    flat = tok.reshape(B * S, H)
    if b_pad > B:
      flat = jnp.concatenate(
          [flat, jnp.zeros(((b_pad - B) * S, H), flat.dtype)], axis=0)
    return flat.astype(bf16)

  def pad_mask(mask):
    if b_pad > B:
      mask = jnp.concatenate(
          [mask, jnp.zeros((b_pad - B, S), mask.dtype)], axis=0)
    return mask

  def band(mask):
    # Masked-mean weights laid out as the (b_pad, chunk) banded pooling
    # operand: row b carries its S weights at columns [(b%k)*S, (b%k+1)*S),
    # so rows [i*k, (i+1)*k) are exactly the nonzero band for chunk i.
    w = mask / jnp.maximum(mask.sum(axis=1, keepdims=True), 1.0)  # all-pad guard
    w = w.reshape(num_chunks, k, S)
    eye_k = jnp.eye(k, dtype=w.dtype)
    banded = jnp.einsum('cks,kj->ckjs', w, eye_k).reshape(b_pad, chunk)
    return banded.astype(bf16)

  q_flat = pad_flatten(q_tok)
  p_flat = pad_flatten(p_tok)
  n_flat = pad_flatten(n_tok)
  q_band = band(pad_mask(q_mask))
  p_band = band(pad_mask(p_mask))
  n_band = band(pad_mask(n_mask))
  wq_b, wr_b = wq.astype(bf16), wr.astype(bf16)
  biasq = bq.astype(f32).reshape(1, H)
  biasr = br.astype(f32).reshape(1, H)

  # --- kernel 1: encode + pool (grid parallel over example-aligned chunks) --
  enc_flops = 3 * 2 * rows * H * H + 3 * 2 * b_pad * chunk * H
  enc_bytes = (3 * rows * H * 2 + 3 * b_pad * chunk * 2
               + 2 * H * H * 2 + 3 * b_pad * H * 4)
  clsq, clsp, clsn = pl.pallas_call(
      _encode_pool_kernel,
      out_shape=(jax.ShapeDtypeStruct((b_pad, H), f32),
                 jax.ShapeDtypeStruct((b_pad, H), f32),
                 jax.ShapeDtypeStruct((b_pad, H), f32)),
      grid=(num_chunks,),
      in_specs=[
          pl.BlockSpec((chunk, H), lambda i: (i, 0)),   # q tokens
          pl.BlockSpec((chunk, H), lambda i: (i, 0)),   # pos tokens
          pl.BlockSpec((chunk, H), lambda i: (i, 0)),   # neg tokens
          pl.BlockSpec((k, chunk), lambda i: (i, 0)),   # q pooling band
          pl.BlockSpec((k, chunk), lambda i: (i, 0)),   # pos pooling band
          pl.BlockSpec((k, chunk), lambda i: (i, 0)),   # neg pooling band
          pl.BlockSpec((H, H), lambda i: (0, 0)),       # Wq (constant block)
          pl.BlockSpec((1, H), lambda i: (0, 0)),       # bq (constant block)
          pl.BlockSpec((H, H), lambda i: (0, 0)),       # Wr (constant block)
          pl.BlockSpec((1, H), lambda i: (0, 0)),       # br (constant block)
      ],
      out_specs=(
          pl.BlockSpec((k, H), lambda i: (i, 0)),
          pl.BlockSpec((k, H), lambda i: (i, 0)),
          pl.BlockSpec((k, H), lambda i: (i, 0)),
      ),
      compiler_params=pltpu.CompilerParams(
          dimension_semantics=("parallel",),   # chunks are independent examples
          vmem_limit_bytes=vmem_limit),
      cost_estimate=pl.CostEstimate(
          flops=int(enc_flops),
          transcendentals=int(3 * rows * H),
          bytes_accessed=int(enc_bytes)),
  )(q_flat, p_flat, n_flat, q_band, p_band, n_band, wq_b, biasq, wr_b, biasr)

  # --- kernel 2: 1/temp + similarity matmuls (single tiny block) -----------
  l_pos_pad, l_neg_pad = pl.pallas_call(
      functools.partial(_logits_kernel, inv_temp=float(1.0 / temp)),
      out_shape=(jax.ShapeDtypeStruct((b_pad, b_pad), f32),
                 jax.ShapeDtypeStruct((b_pad, b_pad), f32)),
  )(clsq, clsp, clsn)

  return l_pos_pad[:B, :B], l_neg_pad[:B, :B]


def _reference(q_tok, q_mask, p_tok, p_mask, n_tok, n_mask, wq, bq, wr, br,
               temp=TEMP):
  """Pure-JAX f32 reference of the same forward semantics (for verification)."""
  def encode(tok, w, b):
    return jnp.tanh(jnp.einsum('bsh,hd->bsd', tok, w) + b)

  def pool(emb, mask):
    masked = emb * mask[:, :, None]
    return masked.sum(axis=1) / jnp.maximum(mask.sum(axis=1, keepdims=True), 1.0)

  cls_q = pool(encode(q_tok, wq, bq), q_mask) / temp
  cls_p = pool(encode(p_tok, wr, br), p_mask)
  cls_n = pool(encode(n_tok, wr, br), n_mask)
  return cls_q @ cls_p.T, cls_q @ cls_n.T


if __name__ == "__main__":
  B, S, H, VOCAB = 8, 16, 128, 64

  key = jax.random.PRNGKey(0)
  ks = jax.random.split(key, 12)

  # Deterministic synthetic "tokenizer" outputs: ids -> embedding lookup (glue).
  embed = (0.02 * jax.random.normal(ks[0], (VOCAB, H))).astype(jnp.float32)
  q_ids = jax.random.randint(ks[1], (B, S), 0, VOCAB)
  p_ids = jax.random.randint(ks[2], (B, S), 0, VOCAB)
  n_ids = jax.random.randint(ks[3], (B, S), 0, VOCAB)
  q_tok, p_tok, n_tok = embed[q_ids], embed[p_ids], embed[n_ids]

  # Attention masks with varying lengths (>=1 real token per row).
  pos_idx = jnp.arange(S)[None, :]
  q_len = jax.random.randint(ks[4], (B, 1), 1, S + 1)
  p_len = jax.random.randint(ks[5], (B, 1), 1, S + 1)
  n_len = jax.random.randint(ks[6], (B, 1), 1, S + 1)
  q_mask = (pos_idx < q_len).astype(jnp.float32)
  p_mask = (pos_idx < p_len).astype(jnp.float32)
  n_mask = (pos_idx < n_len).astype(jnp.float32)

  # Deterministic synthetic encoder parameters (question / reference).
  wq = (0.05 * jax.random.normal(ks[7], (H, H))).astype(jnp.float32)
  wr = (0.05 * jax.random.normal(ks[8], (H, H))).astype(jnp.float32)
  bq = (0.01 * jax.random.normal(ks[9], (1, H))).astype(jnp.float32)
  br = (0.01 * jax.random.normal(ks[10], (1, H))).astype(jnp.float32)

  l_pos, l_neg = question_reference_density(
      q_tok, q_mask, p_tok, p_mask, n_tok, n_mask, wq, bq, wr, br)
  jax.block_until_ready((l_pos, l_neg))

  r_pos, r_neg = _reference(
      q_tok, q_mask, p_tok, p_mask, n_tok, n_mask, wq, bq, wr, br)
  assert l_pos.shape == (B, B) and l_neg.shape == (B, B)
  # bf16 MXU inputs in the kernel -> relaxed tolerance vs the f32 reference.
  assert jnp.allclose(l_pos, r_pos, atol=5e-3, rtol=1e-2)
  assert jnp.allclose(l_neg, r_neg, atol=5e-3, rtol=1e-2)

  print("KERNEL_OK")
</pallas_src>

<mosaic_0001>
module attributes {stable_mosaic.version = 11 : i64} {
  func.func @_encode_pool_kernel(%arg0: i32, %arg1: memref<128x128xbf16, #tpu.memory_space<vmem>>, %arg2: memref<128x128xbf16, #tpu.memory_space<vmem>>, %arg3: memref<128x128xbf16, #tpu.memory_space<vmem>>, %arg4: memref<8x128xbf16, #tpu.memory_space<vmem>>, %arg5: memref<8x128xbf16, #tpu.memory_space<vmem>>, %arg6: memref<8x128xbf16, #tpu.memory_space<vmem>>, %arg7: memref<128x128xbf16, #tpu.memory_space<vmem>>, %arg8: memref<1x128xf32, #tpu.memory_space<vmem>>, %arg9: memref<128x128xbf16, #tpu.memory_space<vmem>>, %arg10: memref<1x128xf32, #tpu.memory_space<vmem>>, %arg11: memref<8x128xf32, #tpu.memory_space<vmem>>, %arg12: memref<8x128xf32, #tpu.memory_space<vmem>>, %arg13: memref<8x128xf32, #tpu.memory_space<vmem>>) attributes {dimension_semantics = [#tpu.dimension_semantics<parallel>], iteration_bounds = array<i64: 1>, scalar_prefetch = 0 : i64, scratch_operands = 0 : i64, tpu.core_type = #tpu.core_type<tc>, window_params = [{transform_indices = @transform_0, window_bounds = array<i64: 128, 128>}, {transform_indices = @transform_1, window_bounds = array<i64: 128, 128>}, {transform_indices = @transform_2, window_bounds = array<i64: 128, 128>}, {transform_indices = @transform_3, window_bounds = array<i64: 8, 128>}, {transform_indices = @transform_4, window_bounds = array<i64: 8, 128>}, {transform_indices = @transform_5, window_bounds = array<i64: 8, 128>}, {pipeline_mode = #tpu.pipeline_mode<synchronous>, transform_indices = @transform_6, window_bounds = array<i64: 128, 128>}, {pipeline_mode = #tpu.pipeline_mode<synchronous>, transform_indices = @transform_7, window_bounds = array<i64: 1, 128>}, {pipeline_mode = #tpu.pipeline_mode<synchronous>, transform_indices = @transform_8, window_bounds = array<i64: 128, 128>}, {pipeline_mode = #tpu.pipeline_mode<synchronous>, transform_indices = @transform_9, window_bounds = array<i64: 1, 128>}, {transform_indices = @transform_10, window_bounds = array<i64: 8, 128>}, {transform_indices = @transform_11, window_bounds = array<i64: 8, 128>}, {transform_indices = @transform_12, window_bounds = array<i64: 8, 128>}]} {
    %c0 = arith.constant 0 : index
    %c0_0 = arith.constant 0 : index
    %0 = vector.load %arg1[%c0, %c0_0] : memref<128x128xbf16, #tpu.memory_space<vmem>>, vector<128x128xbf16>
    %c0_1 = arith.constant 0 : index
    %c0_2 = arith.constant 0 : index
    %1 = vector.load %arg7[%c0_1, %c0_2] : memref<128x128xbf16, #tpu.memory_space<vmem>>, vector<128x128xbf16>
    %cst = arith.constant dense<0.000000e+00> : vector<128x128xf32>
    %2 = tpu.matmul %0, %1, %cst {dimension_numbers = #tpu.dot_dimension_numbers<[1], [0], [0], [1], [0, 0, 1, 1], [], []>} : vector<128x128xbf16>, vector<128x128xbf16>, vector<128x128xf32> -> vector<128x128xf32>
    %c0_3 = arith.constant 0 : index
    %c0_4 = arith.constant 0 : index
    %3 = vector.load %arg8[%c0_3, %c0_4] : memref<1x128xf32, #tpu.memory_space<vmem>>, vector<1x128xf32>
    %4 = vector.broadcast %3 : vector<1x128xf32> to vector<128x128xf32>
    %5 = arith.addf %2, %4 : vector<128x128xf32>
    %6 = math.tanh %5 : vector<128x128xf32>
    %c0_5 = arith.constant 0 : index
    %c0_6 = arith.constant 0 : index
    %7 = vector.load %arg2[%c0_5, %c0_6] : memref<128x128xbf16, #tpu.memory_space<vmem>>, vector<128x128xbf16>
    %c0_7 = arith.constant 0 : index
    %c0_8 = arith.constant 0 : index
    %8 = vector.load %arg9[%c0_7, %c0_8] : memref<128x128xbf16, #tpu.memory_space<vmem>>, vector<128x128xbf16>
    %cst_9 = arith.constant dense<0.000000e+00> : vector<128x128xf32>
    %9 = tpu.matmul %7, %8, %cst_9 {dimension_numbers = #tpu.dot_dimension_numbers<[1], [0], [0], [1], [0, 0, 1, 1], [], []>} : vector<128x128xbf16>, vector<128x128xbf16>, vector<128x128xf32> -> vector<128x128xf32>
    %c0_10 = arith.constant 0 : index
    %c0_11 = arith.constant 0 : index
    %10 = vector.load %arg10[%c0_10, %c0_11] : memref<1x128xf32, #tpu.memory_space<vmem>>, vector<1x128xf32>
    %11 = vector.broadcast %10 : vector<1x128xf32> to vector<128x128xf32>
    %12 = arith.addf %9, %11 : vector<128x128xf32>
    %13 = math.tanh %12 : vector<128x128xf32>
    %c0_12 = arith.constant 0 : index
    %c0_13 = arith.constant 0 : index
    %14 = vector.load %arg3[%c0_12, %c0_13] : memref<128x128xbf16, #tpu.memory_space<vmem>>, vector<128x128xbf16>
    %c0_14 = arith.constant 0 : index
    %c0_15 = arith.constant 0 : index
    %15 = vector.load %arg9[%c0_14, %c0_15] : memref<128x128xbf16, #tpu.memory_space<vmem>>, vector<128x128xbf16>
    %cst_16 = arith.constant dense<0.000000e+00> : vector<128x128xf32>
    %16 = tpu.matmul %14, %15, %cst_16 {dimension_numbers = #tpu.dot_dimension_numbers<[1], [0], [0], [1], [0, 0, 1, 1], [], []>} : vector<128x128xbf16>, vector<128x128xbf16>, vector<128x128xf32> -> vector<128x128xf32>
    %c0_17 = arith.constant 0 : index
    %c0_18 = arith.constant 0 : index
    %17 = vector.load %arg10[%c0_17, %c0_18] : memref<1x128xf32, #tpu.memory_space<vmem>>, vector<1x128xf32>
    %18 = vector.broadcast %17 : vector<1x128xf32> to vector<128x128xf32>
    %19 = arith.addf %16, %18 : vector<128x128xf32>
    %20 = math.tanh %19 : vector<128x128xf32>
    %c0_19 = arith.constant 0 : index
    %c0_20 = arith.constant 0 : index
    %21 = vector.load %arg4[%c0_19, %c0_20] : memref<8x128xbf16, #tpu.memory_space<vmem>>, vector<8x128xbf16>
    %22 = arith.truncf %6 : vector<128x128xf32> to vector<128x128xbf16>
    %cst_21 = arith.constant dense<0.000000e+00> : vector<8x128xf32>
    %23 = tpu.matmul %21, %22, %cst_21 {dimension_numbers = #tpu.dot_dimension_numbers<[1], [0], [0], [1], [0, 0, 1, 1], [], []>} : vector<8x128xbf16>, vector<128x128xbf16>, vector<8x128xf32> -> vector<8x128xf32>
    %c0_22 = arith.constant 0 : index
    %c0_23 = arith.constant 0 : index
    %24 = vector.load %arg11[%c0_22, %c0_23] : memref<8x128xf32, #tpu.memory_space<vmem>>, vector<8x128xf32>
    tpu.vector_store %arg11[%c0_22, %c0_23], %23 {strides = array<i32>} : memref<8x128xf32, #tpu.memory_space<vmem>>, vector<8x128xf32>,
    %c0_24 = arith.constant 0 : index
    %c0_25 = arith.constant 0 : index
    %25 = vector.load %arg5[%c0_24, %c0_25] : memref<8x128xbf16, #tpu.memory_space<vmem>>, vector<8x128xbf16>
    %26 = arith.truncf %13 : vector<128x128xf32> to vector<128x128xbf16>
    %cst_26 = arith.constant dense<0.000000e+00> : vector<8x128xf32>
    %27 = tpu.matmul %25, %26, %cst_26 {dimension_numbers = #tpu.dot_dimension_numbers<[1], [0], [0], [1], [0, 0, 1, 1], [], []>} : vector<8x128xbf16>, vector<128x128xbf16>, vector<8x128xf32> -> vector<8x128xf32>
    %c0_27 = arith.constant 0 : index
    %c0_28 = arith.constant 0 : index
    %28 = vector.load %arg12[%c0_27, %c0_28] : memref<8x128xf32, #tpu.memory_space<vmem>>, vector<8x128xf32>
    tpu.vector_store %arg12[%c0_27, %c0_28], %27 {strides = array<i32>} : memref<8x128xf32, #tpu.memory_space<vmem>>, vector<8x128xf32>,
    %c0_29 = arith.constant 0 : index
    %c0_30 = arith.constant 0 : index
    %29 = vector.load %arg6[%c0_29, %c0_30] : memref<8x128xbf16, #tpu.memory_space<vmem>>, vector<8x128xbf16>
    %30 = arith.truncf %20 : vector<128x128xf32> to vector<128x128xbf16>
    %cst_31 = arith.constant dense<0.000000e+00> : vector<8x128xf32>
    %31 = tpu.matmul %29, %30, %cst_31 {dimension_numbers = #tpu.dot_dimension_numbers<[1], [0], [0], [1], [0, 0, 1, 1], [], []>} : vector<8x128xbf16>, vector<128x128xbf16>, vector<8x128xf32> -> vector<8x128xf32>
    %c0_32 = arith.constant 0 : index
    %c0_33 = arith.constant 0 : index
    %32 = vector.load %arg13[%c0_32, %c0_33] : memref<8x128xf32, #tpu.memory_space<vmem>>, vector<8x128xf32>
    tpu.vector_store %arg13[%c0_32, %c0_33], %31 {strides = array<i32>} : memref<8x128xf32, #tpu.memory_space<vmem>>, vector<8x128xf32>,
    return
  }
  func.func @transform_0(%arg0: i32) -> (i32, i32) {
    %c0_i32 = arith.constant 0 : i32
    %c0_i32_0 = arith.constant 0 : i32
    return %arg0, %c0_i32 : i32, i32
  }
  func.func @transform_1(%arg0: i32) -> (i32, i32) {
    %c0_i32 = arith.constant 0 : i32
    %c0_i32_0 = arith.constant 0 : i32
    return %arg0, %c0_i32 : i32, i32
  }
  func.func @transform_2(%arg0: i32) -> (i32, i32) {
    %c0_i32 = arith.constant 0 : i32
    %c0_i32_0 = arith.constant 0 : i32
    return %arg0, %c0_i32 : i32, i32
  }
  func.func @transform_3(%arg0: i32) -> (i32, i32) {
    %c0_i32 = arith.constant 0 : i32
    %c0_i32_0 = arith.constant 0 : i32
    return %arg0, %c0_i32 : i32, i32
  }
  func.func @transform_4(%arg0: i32) -> (i32, i32) {
    %c0_i32 = arith.constant 0 : i32
    %c0_i32_0 = arith.constant 0 : i32
    return %arg0, %c0_i32 : i32, i32
  }
  func.func @transform_5(%arg0: i32) -> (i32, i32) {
    %c0_i32 = arith.constant 0 : i32
    %c0_i32_0 = arith.constant 0 : i32
    return %arg0, %c0_i32 : i32, i32
  }
  func.func @transform_6(%arg0: i32) -> (i32, i32) {
    %c0_i32 = arith.constant 0 : i32
    %c0_i32_0 = arith.constant 0 : i32
    %c0_i32_1 = arith.constant 0 : i32
    return %c0_i32, %c0_i32_0 : i32, i32
  }
  func.func @transform_7(%arg0: i32) -> (i32, i32) {
    %c0_i32 = arith.constant 0 : i32
    %c0_i32_0 = arith.constant 0 : i32
    %c0_i32_1 = arith.constant 0 : i32
    return %c0_i32, %c0_i32_0 : i32, i32
  }
  func.func @transform_8(%arg0: i32) -> (i32, i32) {
    %c0_i32 = arith.constant 0 : i32
    %c0_i32_0 = arith.constant 0 : i32
    %c0_i32_1 = arith.constant 0 : i32
    return %c0_i32, %c0_i32_0 : i32, i32
  }
  func.func @transform_9(%arg0: i32) -> (i32, i32) {
    %c0_i32 = arith.constant 0 : i32
    %c0_i32_0 = arith.constant 0 : i32
    %c0_i32_1 = arith.constant 0 : i32
    return %c0_i32, %c0_i32_0 : i32, i32
  }
  func.func @transform_10(%arg0: i32) -> (i32, i32) {
    %c0_i32 = arith.constant 0 : i32
    %c0_i32_0 = arith.constant 0 : i32
    return %arg0, %c0_i32 : i32, i32
  }
  func.func @transform_11(%arg0: i32) -> (i32, i32) {
    %c0_i32 = arith.constant 0 : i32
    %c0_i32_0 = arith.constant 0 : i32
    return %arg0, %c0_i32 : i32, i32
  }
  func.func @transform_12(%arg0: i32) -> (i32, i32) {
    %c0_i32 = arith.constant 0 : i32
    %c0_i32_0 = arith.constant 0 : i32
    return %arg0, %c0_i32 : i32, i32
  }
}

</mosaic_0001>

<llo_original>
// kernel: tpu_custom_call.1
$region0: #{tpu_custom_call.1}
  #allocation0 [shape = 'u32[]', space=smem, size = 0x4, offset = 0x4, fixed_abs, tag = 'smem constant byte address 0x4 - core index']
  #allocation1 [shape = 'u32[72,128]{1,0:T(1,128)}', space=vmem, size = 0x9000, scoped, tag = 'internal scratch']
  %s0 = inlined_call_operand.hbm [shape: bf16[128,128], index: 0, kind: input, shape index: {}]
  %s1 = inlined_call_operand.hbm [shape: bf16[128,128], index: 1, kind: input, shape index: {}]
  %s2 = inlined_call_operand.hbm [shape: bf16[128,128], index: 2, kind: input, shape index: {}]
  %s3 = inlined_call_operand.hbm [shape: bf16[8,128], index: 3, kind: input, shape index: {}]
  %s4 = inlined_call_operand.hbm [shape: bf16[8,128], index: 4, kind: input, shape index: {}]
  %s5 = inlined_call_operand.vmem [shape: bf16[8,128], index: 5, kind: input, shape index: {}]
  %s6 = inlined_call_operand.hbm [shape: bf16[128,128], index: 6, kind: input, shape index: {}]
  %s7 = inlined_call_operand.vmem [shape: f32[1,128], index: 7, kind: input, shape index: {}]
  %s8 = inlined_call_operand.hbm [shape: bf16[128,128], index: 8, kind: input, shape index: {}]
  %s9 = inlined_call_operand.vmem [shape: f32[1,128], index: 9, kind: input, shape index: {}]
  %s10 = inlined_call_operand.hbm [shape: f32[8,128], index: 10, kind: output, shape index: {0}]
  %s11 = inlined_call_operand.hbm [shape: f32[8,128], index: 11, kind: output, shape index: {1}]
  %s12 = inlined_call_operand.hbm [shape: f32[8,128], index: 12, kind: output, shape index: {2}]
  %13 = xla_tuple %s10, %s11, %s12
  %s14 = sld [smem:[#allocation0]]
  $region94: #{tpu_custom_call.1} parent=0
    _
  %s16 = ssub.s32 1, %s14
  %s17 = scalar_select 0, %s16, %s14
  $region1: #{tpu_custom_call.1} parent=0
    #allocation2 [shape = 'u8[32768]{0}', space=vmem, size = 0x8000, scoped, tag = 'input window, operand 0, single buffered']
    #allocation3 [shape = 's32[1]{0}', space=sflag, size = 0x4, scoped, tag = 'scoped memory for tpu_custom_call.1']
    #allocation4 [shape = 's32[1]{0}', space=sflag, size = 0x4, scoped, tag = 'scoped memory for tpu_custom_call.1']
    #allocation5 [shape = 'u8[32768]{0}', space=vmem, size = 0x8000, scoped, tag = 'input window, operand 1, single buffered']
    #allocation6 [shape = 's32[1]{0}', space=sflag, size = 0x4, scoped, tag = 'scoped memory for tpu_custom_call.1']
    #allocation7 [shape = 'u8[32768]{0}', space=vmem, size = 0x8000, scoped, tag = 'input window, operand 2, single buffered']
    #allocation8 [shape = 'u8[2048]{0}', space=vmem, size = 0x800, scoped, tag = 'input window, operand 3, single buffered']
    #allocation9 [shape = 's32[1]{0}', space=sflag, size = 0x4, scoped, tag = 'scoped memory for tpu_custom_call.1']
    #allocation10 [shape = 'u8[2048]{0}', space=vmem, size = 0x800, scoped, tag = 'input window, operand 4, single buffered']
    #allocation11 [shape = 'u8[32768]{0}', space=vmem, size = 0x8000, scoped, tag = 'input window, operand 6, single buffered']
    #allocation12 [shape = 's32[1]{0}', space=sflag, size = 0x4, scoped, tag = 'scoped memory for tpu_custom_call.1']
    #allocation13 [shape = 'u8[32768]{0}', space=vmem, size = 0x8000, scoped, tag = 'input window, operand 8, single buffered']
    #allocation14 [shape = 'u8[4096]{0}', space=vmem, size = 0x1000, scoped, tag = 'output window, operand 0, single buffered']
    #allocation15 [shape = 'u8[4096]{0}', space=vmem, size = 0x1000, scoped, tag = 'output window, operand 1, single buffered']
    #allocation16 [shape = 's32[1]{0}', space=sflag, size = 0x4, scoped, tag = 'scoped memory for tpu_custom_call.1']
    #allocation17 [shape = 'u8[4096]{0}', space=vmem, size = 0x1000, scoped, tag = 'output window, operand 2, single buffered']
    %18 = vsyncpa [#allocation3], 0
    %19 = vsyncpa [#allocation6], 0
    %20 = vsyncpa [#allocation9], 0
    %21 = vsyncpa [#allocation12], 0
    %22 = vsyncpa [#allocation4], 0
    %23 = vsyncpa [#allocation16], 0
    // Predicated region
    $region2: #{tpu_custom_call.1} parent=1 // pred_check
      _
    $region3: #{tpu_custom_call.1} parent=1 // pred_check_branch
      %25 = sbr.rel (0) target = $region5
    $region4: #{tpu_custom_call.1} parent=1 // pred_region
      %27 = vsyncadd [#allocation3], 0
      %s28 = sshll.u32 %s0, 4
      %s29 = int_to_ptr.hbm [resolvable:$true] %s28
      %s30 = sshll.u32 [#allocation2], 4
      %s31 = int_to_ptr.vmem [resolvable:$true] %s30
      %36 = dma.hbm_to_vmem [thread:$0]  %s29, 1024, %s31, [#allocation3], 64, 64, 4
    $region5: #{tpu_custom_call.1} parent=1 // pred_fallthru
      _
    // Predicated region
    $region6: #{tpu_custom_call.1} parent=1 // pred_check
      _
    $region7: #{tpu_custom_call.1} parent=1 // pred_check_branch
      %38 = sbr.rel (0) target = $region9
    $region8: #{tpu_custom_call.1} parent=1 // pred_region
      %40 = vsyncadd [#allocation6], 0
      %s41 = sshll.u32 %s1, 4
      %s42 = int_to_ptr.hbm [resolvable:$true] %s41
      %s43 = sshll.u32 [#allocation5], 4
      %s44 = int_to_ptr.vmem [resolvable:$true] %s43
      %49 = dma.hbm_to_vmem [thread:$0]  %s42, 1024, %s44, [#allocation6], 64, 64, 4
    $region9: #{tpu_custom_call.1} parent=1 // pred_fallthru
      _
    // Predicated region
    $region10: #{tpu_custom_call.1} parent=1 // pred_check
      _
    $region11: #{tpu_custom_call.1} parent=1 // pred_check_branch
      %51 = sbr.rel (0) target = $region13
    $region12: #{tpu_custom_call.1} parent=1 // pred_region
      %53 = vsyncadd [#allocation6], 0
      %s54 = sshll.u32 %s2, 4
      %s55 = int_to_ptr.hbm [resolvable:$true] %s54
      %s56 = sshll.u32 [#allocation7], 4
      %s57 = int_to_ptr.vmem [resolvable:$true] %s56
      %62 = dma.hbm_to_vmem [thread:$0]  %s55, 1024, %s57, [#allocation6], 64, 64, 4
    $region13: #{tpu_custom_call.1} parent=1 // pred_fallthru
      _
    // Predicated region
    $region14: #{tpu_custom_call.1} parent=1 // pred_check
      _
    $region15: #{tpu_custom_call.1} parent=1 // pred_check_branch
      %64 = sbr.rel (0) target = $region17
    $region16: #{tpu_custom_call.1} parent=1 // pred_region
      %66 = vsyncadd [#allocation9], 0
      %s68 = sshll.u32 %s3, 4
      %s69 = int_to_ptr.hbm [resolvable:$true] %s68
      %s70 = sshll.u32 [#allocation8], 4
      %s71 = int_to_ptr.vmem [resolvable:$true] %s70
      %73 = dma.hbm_to_vmem [thread:$0]  %s69, 64, %s71, [#allocation9]
    $region17: #{tpu_custom_call.1} parent=1 // pred_fallthru
      _
    // Predicated region
    $region18: #{tpu_custom_call.1} parent=1 // pred_check
      _
    $region19: #{tpu_custom_call.1} parent=1 // pred_check_branch
      %75 = sbr.rel (0) target = $region21
    $region20: #{tpu_custom_call.1} parent=1 // pred_region
      %77 = vsyncadd [#allocation9], 0
      %s79 = sshll.u32 %s4, 4
      %s80 = int_to_ptr.hbm [resolvable:$true] %s79
      %s81 = sshll.u32 [#allocation10], 4
      %s82 = int_to_ptr.vmem [resolvable:$true] %s81
      %84 = dma.hbm_to_vmem [thread:$0]  %s80, 64, %s82, [#allocation9]
    $region21: #{tpu_custom_call.1} parent=1 // pred_fallthru
      _
    // Predicated region
    $region22: #{tpu_custom_call.1} parent=1 // pred_check
      _
    $region23: #{tpu_custom_call.1} parent=1 // pred_check_branch
      %86 = sbr.rel (0) target = $region25
    $region24: #{tpu_custom_call.1} parent=1 // pred_region
      _
    $region25: #{tpu_custom_call.1} parent=1 // pred_fallthru
      _
    // Predicated region
    $region26: #{tpu_custom_call.1} parent=1 // pred_check
      _
    $region27: #{tpu_custom_call.1} parent=1 // pred_check_branch
      %88 = sbr.rel (0) target = $region29
    $region28: #{tpu_custom_call.1} parent=1 // pred_region
      %90 = vsyncadd [#allocation12], 0
      %s91 = sshll.u32 %s6, 4
      %s92 = int_to_ptr.hbm [resolvable:$true] %s91
      %s93 = sshll.u32 [#allocation11], 4
      %s94 = int_to_ptr.vmem [resolvable:$true] %s93
      %99 = dma.hbm_to_vmem [thread:$0]  %s92, 1024, %s94, [#allocation12], 64, 64, 4
    $region29: #{tpu_custom_call.1} parent=1 // pred_fallthru
      _
    // Predicated region
    $region30: #{tpu_custom_call.1} parent=1 // pred_check
      _
    $region31: #{tpu_custom_call.1} parent=1 // pred_check_branch
      %101 = sbr.rel (0) target = $region33
    $region32: #{tpu_custom_call.1} parent=1 // pred_region
      _
    $region33: #{tpu_custom_call.1} parent=1 // pred_fallthru
      _
    // Predicated region
    $region34: #{tpu_custom_call.1} parent=1 // pred_check
      _
    $region35: #{tpu_custom_call.1} parent=1 // pred_check_branch
      %103 = sbr.rel (0) target = $region37
    $region36: #{tpu_custom_call.1} parent=1 // pred_region
      %105 = vsyncadd [#allocation12], 0
      %s106 = sshll.u32 %s8, 4
      %s107 = int_to_ptr.hbm [resolvable:$true] %s106
      %s108 = sshll.u32 [#allocation13], 4
      %s109 = int_to_ptr.vmem [resolvable:$true] %s108
      %114 = dma.hbm_to_vmem [thread:$0]  %s107, 1024, %s109, [#allocation12], 64, 64, 4
    $region37: #{tpu_custom_call.1} parent=1 // pred_fallthru
      _
    // Predicated region
    $region38: #{tpu_custom_call.1} parent=1 // pred_check
      _
    $region39: #{tpu_custom_call.1} parent=1 // pred_check_branch
      %116 = sbr.rel (0) target = $region41
    $region40: #{tpu_custom_call.1} parent=1 // pred_region
      _
    $region41: #{tpu_custom_call.1} parent=1 // pred_fallthru
      _
    // Predicated region
    $region42: #{tpu_custom_call.1} parent=1 // pred_check
      _
    $region43: #{tpu_custom_call.1} parent=1 // pred_check_branch
      %118 = sbr.rel (0) target = $region45
    $region44: #{tpu_custom_call.1} parent=1 // pred_region
      %120 = dma.done [#allocation3], 1024
    $region45: #{tpu_custom_call.1} parent=1 // pred_fallthru
      _
    // Predicated region
    $region46: #{tpu_custom_call.1} parent=1 // pred_check
      _
    $region47: #{tpu_custom_call.1} parent=1 // pred_check_branch
      %122 = sbr.rel (0) target = $region49
    $region48: #{tpu_custom_call.1} parent=1 // pred_region
      %124 = dma.done [#allocation6], 1024
    $region49: #{tpu_custom_call.1} parent=1 // pred_fallthru
      _
    // Predicated region
    $region50: #{tpu_custom_call.1} parent=1 // pred_check
      _
    $region51: #{tpu_custom_call.1} parent=1 // pred_check_branch
      %126 = sbr.rel (0) target = $region53
    $region52: #{tpu_custom_call.1} parent=1 // pred_region
      %128 = dma.done [#allocation6], 1024
    $region53: #{tpu_custom_call.1} parent=1 // pred_fallthru
      _
    // Predicated region
    $region54: #{tpu_custom_call.1} parent=1 // pred_check
      _
    $region55: #{tpu_custom_call.1} parent=1 // pred_check_branch
      %130 = sbr.rel (0) target = $region57
    $region56: #{tpu_custom_call.1} parent=1 // pred_region
      %132 = dma.done [#allocation9], 64
    $region57: #{tpu_custom_call.1} parent=1 // pred_fallthru
      _
    // Predicated region
    $region58: #{tpu_custom_call.1} parent=1 // pred_check
      _
    $region59: #{tpu_custom_call.1} parent=1 // pred_check_branch
      %134 = sbr.rel (0) target = $region61
    $region60: #{tpu_custom_call.1} parent=1 // pred_region
      %136 = dma.done [#allocation9], 64
    $region61: #{tpu_custom_call.1} parent=1 // pred_fallthru
      _
    // Predicated region
    $region62: #{tpu_custom_call.1} parent=1 // pred_check
      _
    $region63: #{tpu_custom_call.1} parent=1 // pred_check_branch
      %138 = sbr.rel (0) target = $region65
    $region64: #{tpu_custom_call.1} parent=1 // pred_region
      %140 = dma.done [#allocation12], 1024
    $region65: #{tpu_custom_call.1} parent=1 // pred_fallthru
      _
    // Predicated region
    $region66: #{tpu_custom_call.1} parent=1 // pred_check
      _
    $region67: #{tpu_custom_call.1} parent=1 // pred_check_branch
      %142 = sbr.rel (0) target = $region69
    $region68: #{tpu_custom_call.1} parent=1 // pred_region
      %144 = dma.done [#allocation12], 1024
    $region69: #{tpu_custom_call.1} parent=1 // pred_fallthru
      _
    %v145 = vld [vmem:[#allocation2] sm:$0xf]
    %v146 = vld [vmem:[#allocation2 + $0x4] sm:$0xf]
    %v147 = vld [vmem:[#allocation2 + $0x8] sm:$0xf]
    %v148 = vld [vmem:[#allocation2 + $0xc] sm:$0xf]
    %v149 = vld [vmem:[#allocation2 + $0x10] sm:$0xf]
    %v150 = vld [vmem:[#allocation2 + $0x14] sm:$0xf]
    %v151 = vld [vmem:[#allocation2 + $0x18] sm:$0xf]
    %v152 = vld [vmem:[#allocation2 + $0x1c] sm:$0xf]
    %v153 = vld [vmem:[#allocation2 + $0x20] sm:$0xf]
    %v154 = vld [vmem:[#allocation2 + $0x24] sm:$0xf]
    %v155 = vld [vmem:[#allocation2 + $0x28] sm:$0xf]
    %v156 = vld [vmem:[#allocation2 + $0x2c] sm:$0xf]
    %v157 = vld [vmem:[#allocation2 + $0x30] sm:$0xf]
    %v158 = vld [vmem:[#allocation2 + $0x34] sm:$0xf]
    %v159 = vld [vmem:[#allocation2 + $0x38] sm:$0xf]
    %v160 = vld [vmem:[#allocation2 + $0x3c] sm:$0xf]
    %v161 = vld [vmem:[#allocation11] sm:$0xf]
    %v162 = vld [vmem:[#allocation11 + $0x4] sm:$0xf]
    %v163 = vld [vmem:[#allocation11 + $0x8] sm:$0xf]
    %v164 = vld [vmem:[#allocation11 + $0xc] sm:$0xf]
    %v165 = vld [vmem:[#allocation11 + $0x10] sm:$0xf]
    %v166 = vld [vmem:[#allocation11 + $0x14] sm:$0xf]
    %v167 = vld [vmem:[#allocation11 + $0x18] sm:$0xf]
    %v168 = vld [vmem:[#allocation11 + $0x1c] sm:$0xf]
    %v169 = vld [vmem:[#allocation11 + $0x20] sm:$0xf]
    %v170 = vld [vmem:[#allocation11 + $0x24] sm:$0xf]
    %v171 = vld [vmem:[#allocation11 + $0x28] sm:$0xf]
    %v172 = vld [vmem:[#allocation11 + $0x2c] sm:$0xf]
    %v173 = vld [vmem:[#allocation11 + $0x30] sm:$0xf]
    %v174 = vld [vmem:[#allocation11 + $0x34] sm:$0xf]
    %v175 = vld [vmem:[#allocation11 + $0x38] sm:$0xf]
    %v176 = vld [vmem:[#allocation11 + $0x3c] sm:$0xf]
    %v177 = vld [vmem:[%s7] sm:$0x1]
    %v179 = vperm.slane %v177, 0
    %v197 = vunpack.c.l.b16 %v145
    %v198 = vunpack.c.l.b16 %v146
    %v199 = vunpack.c.l.b16 %v147
    %v200 = vunpack.c.l.b16 %v148
    %v201 = vunpack.c.l.b16 %v149
    %v202 = vunpack.c.l.b16 %v150
    %v203 = vunpack.c.l.b16 %v151
    %v204 = vunpack.c.l.b16 %v152
    %v205 = vunpack.c.l.b16 %v153
    %v206 = vunpack.c.l.b16 %v154
    %v207 = vunpack.c.l.b16 %v155
    %v208 = vunpack.c.l.b16 %v156
    %v209 = vunpack.c.l.b16 %v157
    %v210 = vunpack.c.l.b16 %v158
    %v211 = vunpack.c.l.b16 %v159
    %v212 = vunpack.c.l.b16 %v160
    %v213 = vpack.c.b16 %v198, %v197
    %v214 = vpack.c.b16 %v200, %v199
    %v215 = vpack.c.b16 %v202, %v201
    %v216 = vpack.c.b16 %v204, %v203
    %v217 = vpack.c.b16 %v206, %v205
    %v218 = vpack.c.b16 %v208, %v207
    %v219 = vpack.c.b16 %v210, %v209
    %v220 = vpack.c.b16 %v212, %v211
    %v245 = vunpack.c.l.b16 %v161
    %v246 = vunpack.c.l.b16 %v162
    %v247 = vunpack.c.l.b16 %v163
    %v248 = vunpack.c.l.b16 %v164
    %v249 = vunpack.c.l.b16 %v165
    %v250 = vunpack.c.l.b16 %v166
    %v251 = vunpack.c.l.b16 %v167
    %v252 = vunpack.c.l.b16 %v168
    %v253 = vunpack.c.l.b16 %v169
    %v254 = vunpack.c.l.b16 %v170
    %v255 = vunpack.c.l.b16 %v171
    %v256 = vunpack.c.l.b16 %v172
    %v257 = vunpack.c.l.b16 %v173
    %v258 = vunpack.c.l.b16 %v174
    %v259 = vunpack.c.l.b16 %v175
    %v260 = vunpack.c.l.b16 %v176
    %v261 = vpack.c.b16 %v246, %v245
    %v262 = vpack.c.b16 %v248, %v247
    %v263 = vpack.c.b16 %v250, %v249
    %v264 = vpack.c.b16 %v252, %v251
    %v265 = vpack.c.b16 %v254, %v253
    %v266 = vpack.c.b16 %v256, %v255
    %v267 = vpack.c.b16 %v258, %v257
    %v268 = vpack.c.b16 %v260, %v259
    %277 = vmatpush.bf16.msra.mxu0 %v268
    %278 = vmatpush.bf16.msra.mxu0 %v267
    %279 = vmatpush.bf16.msra.mxu0 %v266
    %280 = vmatpush.bf16.msra.mxu0 %v265
    %281 = vmatpush.bf16.msra.mxu0 %v264
    %282 = vmatpush.bf16.msra.mxu0 %v263
    %283 = vmatpush.bf16.msra.mxu0 %v262
    %284 = vmatpush.bf16.msra.mxu0 %v261
    %285 = vmatmul.bf16.gmra.mxu0 %v213
    %v286 = vpop.f32.mrf.mxu0
    %v287 = vadd.f32 %v179, %v286
    %v288 = vpop.f32.mrf.mxu0
    %v289 = vadd.f32 %v179, %v288
    %290 = vmatmul.bf16.gmra.mxu0 %v214
    %v291 = vpop.f32.mrf.mxu0
    %v292 = vadd.f32 %v179, %v291
    %v293 = vpop.f32.mrf.mxu0
    %v294 = vadd.f32 %v179, %v293
    %295 = vmatmul.bf16.gmra.mxu0 %v215
    %v296 = vpop.f32.mrf.mxu0
    %v297 = vadd.f32 %v179, %v296
    %v298 = vpop.f32.mrf.mxu0
    %v299 = vadd.f32 %v179, %v298
    %300 = vmatmul.bf16.gmra.mxu0 %v216
    %v301 = vpop.f32.mrf.mxu0
    %v302 = vadd.f32 %v179, %v301
    %v303 = vpop.f32.mrf.mxu0
    %v304 = vadd.f32 %v179, %v303
    %305 = vmatmul.bf16.gmra.mxu0 %v217
    %v306 = vpop.f32.mrf.mxu0
    %v307 = vadd.f32 %v179, %v306
    %v308 = vpop.f32.mrf.mxu0
    %v309 = vadd.f32 %v179, %v308
    %310 = vmatmul.bf16.gmra.mxu0 %v218
    %v311 = vpop.f32.mrf.mxu0
    %v312 = vadd.f32 %v179, %v311
    %v313 = vpop.f32.mrf.mxu0
    %v314 = vadd.f32 %v179, %v313
    %315 = vmatmul.bf16.gmra.mxu0 %v219
    %v316 = vpop.f32.mrf.mxu0
    %v317 = vadd.f32 %v179, %v316
    %v318 = vpop.f32.mrf.mxu0
    %v319 = vadd.f32 %v179, %v318
    %320 = vmatmul.bf16.gmra.mxu0 %v220
    %v321 = vpop.f32.mrf.mxu0
    %v322 = vadd.f32 %v179, %v321
    %v323 = vpop.f32.mrf.mxu0
    %v324 = vadd.f32 %v179, %v323
    %325 = vdwg.mxu0
    %v326 = vtanh.pop %v287
    %v327 = vtanh.pop %v289
    %v328 = vtanh.pop %v292
    %v329 = vtanh.pop %v294
    %v330 = vtanh.pop %v297
    %v331 = vtanh.pop %v299
    %v332 = vtanh.pop %v302
    %v333 = vtanh.pop %v304
    %v334 = vtanh.pop %v307
    %v335 = vtanh.pop %v309
    %v336 = vtanh.pop %v312
    %v337 = vtanh.pop %v314
    %v338 = vtanh.pop %v317
    %v339 = vtanh.pop %v319
    %v340 = vtanh.pop %v322
    %v341 = vtanh.pop %v324
    %v342 = vld [vmem:[#allocation5] sm:$0xf]
    %v343 = vld [vmem:[#allocation5 + $0x4] sm:$0xf]
    %v344 = vld [vmem:[#allocation5 + $0x8] sm:$0xf]
    %v345 = vld [vmem:[#allocation5 + $0xc] sm:$0xf]
    %v346 = vld [vmem:[#allocation5 + $0x10] sm:$0xf]
    %v347 = vld [vmem:[#allocation5 + $0x14] sm:$0xf]
    %v348 = vld [vmem:[#allocation5 + $0x18] sm:$0xf]
    %v349 = vld [vmem:[#allocation5 + $0x1c] sm:$0xf]
    %v350 = vld [vmem:[#allocation5 + $0x20] sm:$0xf]
    %v351 = vld [vmem:[#allocation5 + $0x24] sm:$0xf]
    %v352 = vld [vmem:[#allocation5 + $0x28] sm:$0xf]
    %v353 = vld [vmem:[#allocation5 + $0x2c] sm:$0xf]
    %v354 = vld [vmem:[#allocation5 + $0x30] sm:$0xf]
    %v355 = vld [vmem:[#allocation5 + $0x34] sm:$0xf]
    %v356 = vld [vmem:[#allocation5 + $0x38] sm:$0xf]
    %v357 = vld [vmem:[#allocation5 + $0x3c] sm:$0xf]
    %v358 = vld [vmem:[#allocation13] sm:$0xf]
    %v359 = vld [vmem:[#allocation13 + $0x4] sm:$0xf]
    %v360 = vld [vmem:[#allocation13 + $0x8] sm:$0xf]
    %v361 = vld [vmem:[#allocation13 + $0xc] sm:$0xf]
    %v362 = vld [vmem:[#allocation13 + $0x10] sm:$0xf]
    %v363 = vld [vmem:[#allocation13 + $0x14] sm:$0xf]
    %v364 = vld [vmem:[#allocation13 + $0x18] sm:$0xf]
    %v365 = vld [vmem:[#allocation13 + $0x1c] sm:$0xf]
    %v366 = vld [vmem:[#allocation13 + $0x20] sm:$0xf]
    %v367 = vld [vmem:[#allocation13 + $0x24] sm:$0xf]
    %v368 = vld [vmem:[#allocation13 + $0x28] sm:$0xf]
    %v369 = vld [vmem:[#allocation13 + $0x2c] sm:$0xf]
    %v370 = vld [vmem:[#allocation13 + $0x30] sm:$0xf]
    %v371 = vld [vmem:[#allocation13 + $0x34] sm:$0xf]
    %v372 = vld [vmem:[#allocation13 + $0x38] sm:$0xf]
    %v373 = vld [vmem:[#allocation13 + $0x3c] sm:$0xf]
    %v374 = vld [vmem:[%s9] sm:$0x1]
    %v376 = vperm.slane %v374, 0
    %v394 = vunpack.c.l.b16 %v342
    %v395 = vunpack.c.l.b16 %v343
    %v396 = vunpack.c.l.b16 %v344
    %v397 = vunpack.c.l.b16 %v345
    %v398 = vunpack.c.l.b16 %v346
    %v399 = vunpack.c.l.b16 %v347
    %v400 = vunpack.c.l.b16 %v348
    %v401 = vunpack.c.l.b16 %v349
    %v402 = vunpack.c.l.b16 %v350
    %v403 = vunpack.c.l.b16 %v351
    %v404 = vunpack.c.l.b16 %v352
    %v405 = vunpack.c.l.b16 %v353
    %v406 = vunpack.c.l.b16 %v354
    %v407 = vunpack.c.l.b16 %v355
    %v408 = vunpack.c.l.b16 %v356
    %v409 = vunpack.c.l.b16 %v357
    %v410 = vpack.c.b16 %v395, %v394
    %v411 = vpack.c.b16 %v397, %v396
    %v412 = vpack.c.b16 %v399, %v398
    %v413 = vpack.c.b16 %v401, %v400
    %v414 = vpack.c.b16 %v403, %v402
    %v415 = vpack.c.b16 %v405, %v404
    %v416 = vpack.c.b16 %v407, %v406
    %v417 = vpack.c.b16 %v409, %v408
    %v442 = vunpack.c.l.b16 %v358
    %v443 = vunpack.c.l.b16 %v359
    %v444 = vunpack.c.l.b16 %v360
    %v445 = vunpack.c.l.b16 %v361
    %v446 = vunpack.c.l.b16 %v362
    %v447 = vunpack.c.l.b16 %v363
    %v448 = vunpack.c.l.b16 %v364
    %v449 = vunpack.c.l.b16 %v365
    %v450 = vunpack.c.l.b16 %v366
    %v451 = vunpack.c.l.b16 %v367
    %v452 = vunpack.c.l.b16 %v368
    %v453 = vunpack.c.l.b16 %v369
    %v454 = vunpack.c.l.b16 %v370
    %v455 = vunpack.c.l.b16 %v371
    %v456 = vunpack.c.l.b16 %v372
    %v457 = vunpack.c.l.b16 %v373
    %v458 = vpack.c.b16 %v443, %v442
    %v459 = vpack.c.b16 %v445, %v444
    %v460 = vpack.c.b16 %v447, %v446
    %v461 = vpack.c.b16 %v449, %v448
    %v462 = vpack.c.b16 %v451, %v450
    %v463 = vpack.c.b16 %v453, %v452
    %v464 = vpack.c.b16 %v455, %v454
    %v465 = vpack.c.b16 %v457, %v456
    %474 = vmatpush.bf16.msra.mxu0 %v465
    %475 = vmatpush.bf16.msra.mxu0 %v464
    %476 = vmatpush.bf16.msra.mxu0 %v463
    %477 = vmatpush.bf16.msra.mxu0 %v462
    %478 = vmatpush.bf16.msra.mxu0 %v461
    %479 = vmatpush.bf16.msra.mxu0 %v460
    %480 = vmatpush.bf16.msra.mxu0 %v459
    %481 = vmatpush.bf16.msra.mxu0 %v458
    %482 = vmatmul.bf16.gmra.mxu0 %v410
    %v483 = vpop.f32.mrf.mxu0
    %v484 = vadd.f32 %v376, %v483
    %v485 = vpop.f32.mrf.mxu0
    %v486 = vadd.f32 %v376, %v485
    %487 = vmatmul.bf16.gmra.mxu0 %v411
    %v488 = vpop.f32.mrf.mxu0
    %v489 = vadd.f32 %v376, %v488
    %v490 = vpop.f32.mrf.mxu0
    %v491 = vadd.f32 %v376, %v490
    %492 = vmatmul.bf16.gmra.mxu0 %v412
    %v493 = vpop.f32.mrf.mxu0
    %v494 = vadd.f32 %v376, %v493
    %v495 = vpop.f32.mrf.mxu0
    %v496 = vadd.f32 %v376, %v495
    %497 = vmatmul.bf16.gmra.mxu0 %v413
    %v498 = vpop.f32.mrf.mxu0
    %v499 = vadd.f32 %v376, %v498
    %v500 = vpop.f32.mrf.mxu0
    %v501 = vadd.f32 %v376, %v500
    %502 = vmatmul.bf16.gmra.mxu0 %v414
    %v503 = vpop.f32.mrf.mxu0
    %v504 = vadd.f32 %v376, %v503
    %v505 = vpop.f32.mrf.mxu0
    %v506 = vadd.f32 %v376, %v505
    %507 = vmatmul.bf16.gmra.mxu0 %v415
    %v508 = vpop.f32.mrf.mxu0
    %v509 = vadd.f32 %v376, %v508
    %v510 = vpop.f32.mrf.mxu0
    %v511 = vadd.f32 %v376, %v510
    %512 = vmatmul.bf16.gmra.mxu0 %v416
    %v513 = vpop.f32.mrf.mxu0
    %v514 = vadd.f32 %v376, %v513
    %v515 = vpop.f32.mrf.mxu0
    %v516 = vadd.f32 %v376, %v515
    %517 = vmatmul.bf16.gmra.mxu0 %v417
    %v518 = vpop.f32.mrf.mxu0
    %v519 = vadd.f32 %v376, %v518
    %v520 = vpop.f32.mrf.mxu0
    %v521 = vadd.f32 %v376, %v520
    %522 = vdwg.mxu0
    %v523 = vtanh.pop %v484
    %v524 = vtanh.pop %v486
    %v525 = vtanh.pop %v489
    %v526 = vtanh.pop %v491
    %v527 = vtanh.pop %v494
    %v528 = vtanh.pop %v496
    %v529 = vtanh.pop %v499
    %v530 = vtanh.pop %v501
    %v531 = vtanh.pop %v504
    %v532 = vtanh.pop %v506
    %v533 = vtanh.pop %v509
    %v534 = vtanh.pop %v511
    %v535 = vtanh.pop %v514
    %v536 = vtanh.pop %v516
    %v537 = vtanh.pop %v519
    %v538 = vtanh.pop %v521
    %v539 = vld [vmem:[#allocation7] sm:$0xf]
    %v540 = vld [vmem:[#allocation7 + $0x4] sm:$0xf]
    %v541 = vld [vmem:[#allocation7 + $0x8] sm:$0xf]
    %v542 = vld [vmem:[#allocation7 + $0xc] sm:$0xf]
    %v543 = vld [vmem:[#allocation7 + $0x10] sm:$0xf]
    %v544 = vld [vmem:[#allocation7 + $0x14] sm:$0xf]
    %v545 = vld [vmem:[#allocation7 + $0x18] sm:$0xf]
    %v546 = vld [vmem:[#allocation7 + $0x1c] sm:$0xf]
    %v547 = vld [vmem:[#allocation7 + $0x20] sm:$0xf]
    %v548 = vld [vmem:[#allocation7 + $0x24] sm:$0xf]
    %v549 = vld [vmem:[#allocation7 + $0x28] sm:$0xf]
    %v550 = vld [vmem:[#allocation7 + $0x2c] sm:$0xf]
    %v551 = vld [vmem:[#allocation7 + $0x30] sm:$0xf]
    %v552 = vld [vmem:[#allocation7 + $0x34] sm:$0xf]
    %v553 = vld [vmem:[#allocation7 + $0x38] sm:$0xf]
    %v554 = vld [vmem:[#allocation7 + $0x3c] sm:$0xf]
    %v571 = vunpack.c.l.b16 %v539
    %v572 = vunpack.c.l.b16 %v540
    %v573 = vunpack.c.l.b16 %v541
    %v574 = vunpack.c.l.b16 %v542
    %v575 = vunpack.c.l.b16 %v543
    %v576 = vunpack.c.l.b16 %v544
    %v577 = vunpack.c.l.b16 %v545
    %v578 = vunpack.c.l.b16 %v546
    %v579 = vunpack.c.l.b16 %v547
    %v580 = vunpack.c.l.b16 %v548
    %v581 = vunpack.c.l.b16 %v549
    %v582 = vunpack.c.l.b16 %v550
    %v583 = vunpack.c.l.b16 %v551
    %v584 = vunpack.c.l.b16 %v552
    %v585 = vunpack.c.l.b16 %v553
    %v586 = vunpack.c.l.b16 %v554
    %v587 = vpack.c.b16 %v572, %v571
    %v588 = vpack.c.b16 %v574, %v573
    %v589 = vpack.c.b16 %v576, %v575
    %v590 = vpack.c.b16 %v578, %v577
    %v591 = vpack.c.b16 %v580, %v579
    %v592 = vpack.c.b16 %v582, %v581
    %v593 = vpack.c.b16 %v584, %v583
    %v594 = vpack.c.b16 %v586, %v585
    %603 = vmatpush.bf16.msra.mxu0 %v465
    %604 = vmatpush.bf16.msra.mxu0 %v464
    %605 = vmatpush.bf16.msra.mxu0 %v463
    %606 = vmatpush.bf16.msra.mxu0 %v462
    %607 = vmatpush.bf16.msra.mxu0 %v461
    %608 = vmatpush.bf16.msra.mxu0 %v460
    %609 = vmatpush.bf16.msra.mxu0 %v459
    %610 = vmatpush.bf16.msra.mxu0 %v458
    %611 = vmatmul.bf16.gmra.mxu0 %v587
    %v612 = vpop.f32.mrf.mxu0
    %v613 = vadd.f32 %v376, %v612
    %v614 = vpop.f32.mrf.mxu0
    %v615 = vadd.f32 %v376, %v614
    %616 = vmatmul.bf16.gmra.mxu0 %v588
    %v617 = vpop.f32.mrf.mxu0
    %v618 = vadd.f32 %v376, %v617
    %v619 = vpop.f32.mrf.mxu0
    %v620 = vadd.f32 %v376, %v619
    %621 = vmatmul.bf16.gmra.mxu0 %v589
    %v622 = vpop.f32.mrf.mxu0
    %v623 = vadd.f32 %v376, %v622
    %v624 = vpop.f32.mrf.mxu0
    %v625 = vadd.f32 %v376, %v624
    %626 = vmatmul.bf16.gmra.mxu0 %v590
    %v627 = vpop.f32.mrf.mxu0
    %v628 = vadd.f32 %v376, %v627
    %v629 = vpop.f32.mrf.mxu0
    %v630 = vadd.f32 %v376, %v629
    %631 = vmatmul.bf16.gmra.mxu0 %v591
    %v632 = vpop.f32.mrf.mxu0
    %v633 = vadd.f32 %v376, %v632
    %v634 = vpop.f32.mrf.mxu0
    %v635 = vadd.f32 %v376, %v634
    %636 = vmatmul.bf16.gmra.mxu0 %v592
    %v637 = vpop.f32.mrf.mxu0
    %v638 = vadd.f32 %v376, %v637
    %v639 = vpop.f32.mrf.mxu0
    %v640 = vadd.f32 %v376, %v639
    %641 = vmatmul.bf16.gmra.mxu0 %v593
    %v642 = vpop.f32.mrf.mxu0
    %v643 = vadd.f32 %v376, %v642
    %v644 = vpop.f32.mrf.mxu0
    %v645 = vadd.f32 %v376, %v644
    %646 = vmatmul.bf16.gmra.mxu0 %v594
    %v647 = vpop.f32.mrf.mxu0
    %v648 = vadd.f32 %v376, %v647
    %v649 = vpop.f32.mrf.mxu0
    %v650 = vadd.f32 %v376, %v649
    %651 = vdwg.mxu0
    %v652 = vtanh.pop %v613
    %v653 = vtanh.pop %v615
    %v654 = vtanh.pop %v618
    %v655 = vtanh.pop %v620
    %v656 = vtanh.pop %v623
    %v657 = vtanh.pop %v625
    %v658 = vtanh.pop %v628
    %v659 = vtanh.pop %v630
    %v660 = vtanh.pop %v633
    %v661 = vtanh.pop %v635
    %v662 = vtanh.pop %v638
    %v663 = vtanh.pop %v640
    %v664 = vtanh.pop %v643
    %v665 = vtanh.pop %v645
    %v666 = vtanh.pop %v648
    %v667 = vtanh.pop %v650
    %v668 = vld [vmem:[#allocation8] sm:$0xf]
    %v669 = vpack.c.bf16 %v327, %v326
    %v670 = vpack.c.bf16 %v329, %v328
    %v671 = vpack.c.bf16 %v331, %v330
    %v672 = vpack.c.bf16 %v333, %v332
    %v673 = vpack.c.bf16 %v335, %v334
    %v674 = vpack.c.bf16 %v337, %v336
    %v675 = vpack.c.bf16 %v339, %v338
    %v676 = vpack.c.bf16 %v341, %v340
    %677 = vmatpush.bf16.msra.mxu0 %v676
    %678 = vmatpush.bf16.msra.mxu0 %v675
    %679 = vmatpush.bf16.msra.mxu0 %v674
    %680 = vmatpush.bf16.msra.mxu0 %v673
    %681 = vmatpush.bf16.msra.mxu0 %v672
    %682 = vmatpush.bf16.msra.mxu0 %v671
    %683 = vmatpush.bf16.msra.mxu0 %v670
    %684 = vmatpush.bf16.msra.mxu0 %v669
    %685 = vmatmul.bf16.gmra.mxu0 %v668
    %v686 = vpop.f32.mrf.mxu0
    %v687 = vadd.f32 0.0, %v686
    %v688 = vpop.f32.mrf.mxu0
    %689 = vdwg.mxu0
    %690 = vst [vmem:[#allocation14] sm:$0xff] %v687
    %v691 = vld [vmem:[#allocation10] sm:$0xf]
    %v692 = vpack.c.bf16 %v524, %v523
    %v693 = vpack.c.bf16 %v526, %v525
    %v694 = vpack.c.bf16 %v528, %v527
    %v695 = vpack.c.bf16 %v530, %v529
    %v696 = vpack.c.bf16 %v532, %v531
    %v697 = vpack.c.bf16 %v534, %v533
    %v698 = vpack.c.bf16 %v536, %v535
    %v699 = vpack.c.bf16 %v538, %v537
    %700 = vmatpush.bf16.msra.mxu0 %v699
    %701 = vmatpush.bf16.msra.mxu0 %v698
    %702 = vmatpush.bf16.msra.mxu0 %v697
    %703 = vmatpush.bf16.msra.mxu0 %v696
    %704 = vmatpush.bf16.msra.mxu0 %v695
    %705 = vmatpush.bf16.msra.mxu0 %v694
    %706 = vmatpush.bf16.msra.mxu0 %v693
    %707 = vmatpush.bf16.msra.mxu0 %v692
    %708 = vmatmul.bf16.gmra.mxu0 %v691
    %v709 = vpop.f32.mrf.mxu0
    %v710 = vadd.f32 0.0, %v709
    %v711 = vpop.f32.mrf.mxu0
    %712 = vdwg.mxu0
    %713 = vst [vmem:[#allocation15] sm:$0xff] %v710
    %v714 = vld [vmem:[%s5] sm:$0xf]
    %v715 = vpack.c.bf16 %v653, %v652
    %v716 = vpack.c.bf16 %v655, %v654
    %v717 = vpack.c.bf16 %v657, %v656
    %v718 = vpack.c.bf16 %v659, %v658
    %v719 = vpack.c.bf16 %v661, %v660
    %v720 = vpack.c.bf16 %v663, %v662
    %v721 = vpack.c.bf16 %v665, %v664
    %v722 = vpack.c.bf16 %v667, %v666
    %723 = vmatpush.bf16.msra.mxu0 %v722
    %724 = vmatpush.bf16.msra.mxu0 %v721
    %725 = vmatpush.bf16.msra.mxu0 %v720
    %726 = vmatpush.bf16.msra.mxu0 %v719
    %727 = vmatpush.bf16.msra.mxu0 %v718
    %728 = vmatpush.bf16.msra.mxu0 %v717
    %729 = vmatpush.bf16.msra.mxu0 %v716
    %730 = vmatpush.bf16.msra.mxu0 %v715
    %731 = vmatmul.bf16.gmra.mxu0 %v714
    %v732 = vpop.f32.mrf.mxu0
    %v733 = vadd.f32 0.0, %v732
    %v734 = vpop.f32.mrf.mxu0
    %735 = vdwg.mxu0
    %736 = vst [vmem:[#allocation17] sm:$0xff] %v733
    // Predicated region
    $region70: #{tpu_custom_call.1} parent=1 // pred_check
      _
    $region71: #{tpu_custom_call.1} parent=1 // pred_check_branch
      %738 = sbr.rel (0) target = $region73
    $region72: #{tpu_custom_call.1} parent=1 // pred_region
      %740 = vsyncadd [#allocation4], 0
      %s742 = sshll.u32 [#allocation14], 4
      %s743 = int_to_ptr.vmem [resolvable:$true] %s742
      %s744 = sshll.u32 %s10, 4
      %s745 = int_to_ptr.hbm [resolvable:$true] %s744
      %747 = dma.vmem_to_hbm [thread:$0]  %s743, 128, %s745, [#allocation4]
    $region73: #{tpu_custom_call.1} parent=1 // pred_fallthru
      _
    // Predicated region
    $region74: #{tpu_custom_call.1} parent=1 // pred_check
      _
    $region75: #{tpu_custom_call.1} parent=1 // pred_check_branch
      %749 = sbr.rel (0) target = $region77
    $region76: #{tpu_custom_call.1} parent=1 // pred_region
      %751 = vsyncadd [#allocation16], 0
      %s753 = sshll.u32 [#allocation15], 4
      %s754 = int_to_ptr.vmem [resolvable:$true] %s753
      %s755 = sshll.u32 %s11, 4
      %s756 = int_to_ptr.hbm [resolvable:$true] %s755
      %758 = dma.vmem_to_hbm [thread:$0]  %s754, 128, %s756, [#allocation16]
    $region77: #{tpu_custom_call.1} parent=1 // pred_fallthru
      _
    // Predicated region
    $region78: #{tpu_custom_call.1} parent=1 // pred_check
      _
    $region79: #{tpu_custom_call.1} parent=1 // pred_check_branch
      %760 = sbr.rel (0) target = $region81
    $region80: #{tpu_custom_call.1} parent=1 // pred_region
      %762 = vsyncadd [#allocation16], 0
      %s764 = sshll.u32 [#allocation17], 4
      %s765 = int_to_ptr.vmem [resolvable:$true] %s764
      %s766 = sshll.u32 %s12, 4
      %s767 = int_to_ptr.hbm [resolvable:$true] %s766
      %769 = dma.vmem_to_hbm [thread:$0]  %s765, 128, %s767, [#allocation16]
    $region81: #{tpu_custom_call.1} parent=1 // pred_fallthru
      _
    // Predicated region
    $region82: #{tpu_custom_call.1} parent=1 // pred_check
      _
    $region83: #{tpu_custom_call.1} parent=1 // pred_check_branch
      %771 = sbr.rel (0) target = $region85
    $region84: #{tpu_custom_call.1} parent=1 // pred_region
      %773 = dma.done [#allocation4], 128
    $region85: #{tpu_custom_call.1} parent=1 // pred_fallthru
      _
    // Predicated region
    $region86: #{tpu_custom_call.1} parent=1 // pred_check
      _
    $region87: #{tpu_custom_call.1} parent=1 // pred_check_branch
      %775 = sbr.rel (0) target = $region89
    $region88: #{tpu_custom_call.1} parent=1 // pred_region
      %777 = dma.done [#allocation16], 128
    $region89: #{tpu_custom_call.1} parent=1 // pred_fallthru
      _
    // Predicated region
    $region90: #{tpu_custom_call.1} parent=1 // pred_check
      _
    $region91: #{tpu_custom_call.1} parent=1 // pred_check_branch
      %779 = sbr.rel (0) target = $region93
    $region92: #{tpu_custom_call.1} parent=1 // pred_region
      %781 = dma.done [#allocation16], 128
    $region93: #{tpu_custom_call.1} parent=1 // pred_fallthru
      _
    %782 = vsyncpa [#allocation3], 1
    %783 = vsyncpa [#allocation6], 1
    %784 = vsyncpa [#allocation9], 1
    %785 = vsyncpa [#allocation12], 1
    %786 = vsyncpa [#allocation4], 1
    %787 = vsyncpa [#allocation16], 1

</llo_original>
